<compile_context>
chip_gen: v6e
topology: v6e:2x2x1
jax: 0.10.0
libtpu: 0.0.40
codegen_flags: <defaults>
</compile_context>

<pallas_src>
import functools

import jax
import jax.numpy as jnp
from jax.experimental import pallas as pl
from jax.experimental.pallas import tpu as pltpu

H1, H2, H3 = 512, 256, 128
K_PAD = 128   # fc1 contraction dim (input_size) zero-padded to a full lane group
C_PAD = 128   # classifier output dim zero-padded to a full lane group


def mlp_kernel(x_ref, w1_ref, w2_ref, w3_ref, wc_ref, b_ref, out_ref):
    # Packed biases: [1, H1 + H2 + H3 + C_PAD] f32; static lane-aligned slices.
    b1 = b_ref[:, 0:H1]
    b2 = b_ref[:, H1:H1 + H2]
    b3 = b_ref[:, H1 + H2:H1 + H2 + H3]
    bc = b_ref[:, H1 + H2 + H3:H1 + H2 + H3 + C_PAD]

    # fc1 + relu : [TM, K_PAD] @ [K_PAD, 512]  (bf16 operands, f32 accumulate)
    x = x_ref[...]                                   # already bf16 (cast in wrapper)
    h1 = jnp.dot(x, w1_ref[...], preferred_element_type=jnp.float32)
    h1 = jnp.maximum(h1 + b1, 0.0).astype(jnp.bfloat16)
    # fc2 + relu : [TM, 512] @ [512, 256]
    h2 = jnp.dot(h1, w2_ref[...], preferred_element_type=jnp.float32)
    h2 = jnp.maximum(h2 + b2, 0.0).astype(jnp.bfloat16)
    # fc3 + relu : [TM, 256] @ [256, 128]
    h3 = jnp.dot(h2, w3_ref[...], preferred_element_type=jnp.float32)
    h3 = jnp.maximum(h3 + b3, 0.0).astype(jnp.bfloat16)
    # classifier_output : [TM, 128] @ [128, C_PAD]  (lane-dense store)
    logits = jnp.dot(h3, wc_ref[...], preferred_element_type=jnp.float32)
    out_ref[...] = (logits + bc).astype(out_ref.dtype)


def _round_up(n, m):
    return ((n + m - 1) // m) * m


def _pick_tm(B):
    """Batch tile: big tiles for big B; >=2 grid steps for medium B (v7x dual-TC)."""
    if B >= 512:
        return 256
    if B >= 16:
        return _round_up(pl.cdiv(B, 2), 8)   # guarantees grid length >= 2
    return _round_up(max(B, 1), 8)           # tiny batch: single 8-aligned tile


def prepare_params(params, input_size, num_classes):
    """Pad + cast torch-style params into kernel layout (bf16 weights, packed f32 biases)."""
    assert input_size <= K_PAD, f"input_size={input_size} exceeds K_PAD={K_PAD}"
    assert num_classes <= C_PAD, f"num_classes={num_classes} exceeds C_PAD={C_PAD}"
    w1, b1, w2, b2, w3, b3, wc, bc = params
    w1p = jnp.zeros((K_PAD, H1), jnp.float32).at[:input_size, :].set(w1)
    wcp = jnp.zeros((H3, C_PAD), jnp.float32).at[:, :num_classes].set(wc)
    bcp = jnp.zeros((1, C_PAD), jnp.float32).at[:, :num_classes].set(bc)
    b_all = jnp.concatenate([b1, b2, b3, bcp], axis=1)          # (1, 1024), f32
    return (w1p.astype(jnp.bfloat16),
            w2.astype(jnp.bfloat16),
            w3.astype(jnp.bfloat16),
            wcp.astype(jnp.bfloat16),
            b_all)


def custom_network_forward(x, kernel_params, num_classes):
    """Forward pass of CustomNetwork (classifier head), Pallas TPU kernel."""
    w1p, w2b, w3b, wcp, b_all = kernel_params
    B, input_size = x.shape
    assert input_size <= K_PAD

    TM = _pick_tm(B)
    grid = (pl.cdiv(B, TM),)

    # Pad the contraction dim only (no batch pad copy) and cast to bf16 at the
    # DMA boundary; XLA fuses pad + cast into one pass.
    xp = jnp.zeros((B, K_PAD), jnp.bfloat16).at[:, :input_size].set(
        x.astype(jnp.bfloat16))

    flops = 2 * B * (K_PAD * H1 + H1 * H2 + H2 * H3 + H3 * C_PAD)
    bytes_accessed = (xp.size * 2 + b_all.size * 4 + B * C_PAD * 4
                      + 2 * (w1p.size + w2b.size + w3b.size + wcp.size))

    out = pl.pallas_call(
        mlp_kernel,
        out_shape=jax.ShapeDtypeStruct((B, C_PAD), jnp.float32),
        grid=grid,
        in_specs=[
            pl.BlockSpec((TM, K_PAD), lambda i: (i, 0)),        # activations: tiled
            pl.BlockSpec(w1p.shape, lambda i: (0, 0)),          # weights: resident
            pl.BlockSpec(w2b.shape, lambda i: (0, 0)),
            pl.BlockSpec(w3b.shape, lambda i: (0, 0)),
            pl.BlockSpec(wcp.shape, lambda i: (0, 0)),
            pl.BlockSpec(b_all.shape, lambda i: (0, 0)),        # packed biases
        ],
        out_specs=pl.BlockSpec((TM, C_PAD), lambda i: (i, 0)),
        compiler_params=pltpu.CompilerParams(
            dimension_semantics=("parallel",),
            vmem_limit_bytes=32 << 20,   # actual footprint ~2-3 MiB; safe on v7x's 64 MiB
        ),
        cost_estimate=pl.CostEstimate(
            flops=flops, transcendentals=0, bytes_accessed=bytes_accessed),
    )(xp, w1p, w2b, w3b, wcp, b_all)

    return out[:B, :num_classes]


def init_params(key, input_size, num_classes):
    """Deterministic torch-like init. Weights stored as [in, out] (transposed vs torch)."""
    ks = jax.random.split(key, 8)

    def linear(kw, kb, fan_in, fan_out):
        bound = 1.0 / jnp.sqrt(fan_in)
        w = jax.random.uniform(kw, (fan_in, fan_out), jnp.float32, -bound, bound)
        b = jax.random.uniform(kb, (1, fan_out), jnp.float32, -bound, bound)
        return w, b

    w1, b1 = linear(ks[0], ks[1], input_size, H1)
    w2, b2 = linear(ks[2], ks[3], H1, H2)
    w3, b3 = linear(ks[4], ks[5], H2, H3)
    wc, bc = linear(ks[6], ks[7], H3, num_classes)
    return (w1, b1, w2, b2, w3, b3, wc, bc)


def reference_forward_f32(x, params):
    """Pure-f32 reference (torch semantics)."""
    w1, b1, w2, b2, w3, b3, wc, bc = params
    h = jax.nn.relu(x @ w1 + b1)
    h = jax.nn.relu(h @ w2 + b2)
    h = jax.nn.relu(h @ w3 + b3)
    return h @ wc + bc


def reference_forward_bf16(x, params):
    """Reference with the same numerics as the kernel (bf16 operands, f32 accumulate)."""
    w1, b1, w2, b2, w3, b3, wc, bc = params

    def mm(a, w):
        return jnp.dot(a.astype(jnp.bfloat16), w.astype(jnp.bfloat16),
                       preferred_element_type=jnp.float32)

    h = jax.nn.relu(mm(x, w1) + b1)
    h = jax.nn.relu(mm(h, w2) + b2)
    h = jax.nn.relu(mm(h, w3) + b3)
    return mm(h, wc) + bc


if __name__ == "__main__":
    key = jax.random.PRNGKey(0)
    k_x, k_p = jax.random.split(key)

    batch = 8
    input_size = 20
    num_classes = 10

    x = jax.random.normal(k_x, (batch, input_size), jnp.float32)
    params = init_params(k_p, input_size, num_classes)
    kparams = prepare_params(params, input_size, num_classes)

    fwd = jax.jit(functools.partial(custom_network_forward, num_classes=num_classes))
    out = jax.block_until_ready(fwd(x, kparams))

    assert out.shape == (batch, num_classes)

    ref_bf16 = reference_forward_bf16(x, params)   # same numerics as kernel
    ref_f32 = reference_forward_f32(x, params)     # true module (f32) semantics
    assert jnp.allclose(out, ref_bf16, atol=2e-3, rtol=2e-3)
    assert jnp.allclose(out, ref_f32, atol=5e-2, rtol=5e-2)

    print("KERNEL_OK")
</pallas_src>

<mosaic_0001>
module attributes {stable_mosaic.version = 11 : i64} {
  func.func @mlp_kernel(%arg0: i32, %arg1: memref<8x128xbf16, #tpu.memory_space<vmem>>, %arg2: memref<128x512xbf16, #tpu.memory_space<vmem>>, %arg3: memref<512x256xbf16, #tpu.memory_space<vmem>>, %arg4: memref<256x128xbf16, #tpu.memory_space<vmem>>, %arg5: memref<128x128xbf16, #tpu.memory_space<vmem>>, %arg6: memref<1x1024xf32, #tpu.memory_space<vmem>>, %arg7: memref<8x128xf32, #tpu.memory_space<vmem>>) attributes {dimension_semantics = [#tpu.dimension_semantics<parallel>], iteration_bounds = array<i64: 1>, scalar_prefetch = 0 : i64, scratch_operands = 0 : i64, tpu.core_type = #tpu.core_type<tc>, window_params = [{transform_indices = @transform_0, window_bounds = array<i64: 8, 128>}, {pipeline_mode = #tpu.pipeline_mode<synchronous>, transform_indices = @transform_1, window_bounds = array<i64: 128, 512>}, {pipeline_mode = #tpu.pipeline_mode<synchronous>, transform_indices = @transform_2, window_bounds = array<i64: 512, 256>}, {pipeline_mode = #tpu.pipeline_mode<synchronous>, transform_indices = @transform_3, window_bounds = array<i64: 256, 128>}, {pipeline_mode = #tpu.pipeline_mode<synchronous>, transform_indices = @transform_4, window_bounds = array<i64: 128, 128>}, {pipeline_mode = #tpu.pipeline_mode<synchronous>, transform_indices = @transform_5, window_bounds = array<i64: 1, 1024>}, {transform_indices = @transform_6, window_bounds = array<i64: 8, 128>}]} {
    %c0 = arith.constant 0 : index
    %c0_0 = arith.constant 0 : index
    %0 = vector.load %arg6[%c0, %c0_0] : memref<1x1024xf32, #tpu.memory_space<vmem>>, vector<1x512xf32>
    %c0_1 = arith.constant 0 : index
    %c512 = arith.constant 512 : index
    %1 = vector.load %arg6[%c0_1, %c512] : memref<1x1024xf32, #tpu.memory_space<vmem>>, vector<1x256xf32>
    %c0_2 = arith.constant 0 : index
    %c768 = arith.constant 768 : index
    %2 = vector.load %arg6[%c0_2, %c768] : memref<1x1024xf32, #tpu.memory_space<vmem>>, vector<1x128xf32>
    %c0_3 = arith.constant 0 : index
    %c896 = arith.constant 896 : index
    %3 = vector.load %arg6[%c0_3, %c896] : memref<1x1024xf32, #tpu.memory_space<vmem>>, vector<1x128xf32>
    %c0_4 = arith.constant 0 : index
    %c0_5 = arith.constant 0 : index
    %4 = vector.load %arg1[%c0_4, %c0_5] : memref<8x128xbf16, #tpu.memory_space<vmem>>, vector<8x128xbf16>
    %c0_6 = arith.constant 0 : index
    %c0_7 = arith.constant 0 : index
    %5 = vector.load %arg2[%c0_6, %c0_7] : memref<128x512xbf16, #tpu.memory_space<vmem>>, vector<128x512xbf16>
    %cst = arith.constant dense<0.000000e+00> : vector<8x512xf32>
    %6 = tpu.matmul %4, %5, %cst {dimension_numbers = #tpu.dot_dimension_numbers<[1], [0], [0], [1], [0, 0, 1, 1], [], []>} : vector<8x128xbf16>, vector<128x512xbf16>, vector<8x512xf32> -> vector<8x512xf32>
    %7 = vector.broadcast %0 : vector<1x512xf32> to vector<8x512xf32>
    %8 = arith.addf %6, %7 : vector<8x512xf32>
    %cst_8 = arith.constant 0.000000e+00 : f32
    %9 = vector.broadcast %cst_8 : f32 to vector<8x512xf32>
    %10 = arith.maximumf %8, %9 : vector<8x512xf32>
    %11 = arith.truncf %10 : vector<8x512xf32> to vector<8x512xbf16>
    %c0_9 = arith.constant 0 : index
    %c0_10 = arith.constant 0 : index
    %12 = vector.load %arg3[%c0_9, %c0_10] : memref<512x256xbf16, #tpu.memory_space<vmem>>, vector<512x256xbf16>
    %cst_11 = arith.constant dense<0.000000e+00> : vector<8x256xf32>
    %13 = tpu.matmul %11, %12, %cst_11 {dimension_numbers = #tpu.dot_dimension_numbers<[1], [0], [0], [1], [0, 0, 1, 1], [], []>} : vector<8x512xbf16>, vector<512x256xbf16>, vector<8x256xf32> -> vector<8x256xf32>
    %14 = vector.broadcast %1 : vector<1x256xf32> to vector<8x256xf32>
    %15 = arith.addf %13, %14 : vector<8x256xf32>
    %cst_12 = arith.constant 0.000000e+00 : f32
    %16 = vector.broadcast %cst_12 : f32 to vector<8x256xf32>
    %17 = arith.maximumf %15, %16 : vector<8x256xf32>
    %18 = arith.truncf %17 : vector<8x256xf32> to vector<8x256xbf16>
    %c0_13 = arith.constant 0 : index
    %c0_14 = arith.constant 0 : index
    %19 = vector.load %arg4[%c0_13, %c0_14] : memref<256x128xbf16, #tpu.memory_space<vmem>>, vector<256x128xbf16>
    %cst_15 = arith.constant dense<0.000000e+00> : vector<8x128xf32>
    %20 = tpu.matmul %18, %19, %cst_15 {dimension_numbers = #tpu.dot_dimension_numbers<[1], [0], [0], [1], [0, 0, 1, 1], [], []>} : vector<8x256xbf16>, vector<256x128xbf16>, vector<8x128xf32> -> vector<8x128xf32>
    %21 = vector.broadcast %2 : vector<1x128xf32> to vector<8x128xf32>
    %22 = arith.addf %20, %21 : vector<8x128xf32>
    %cst_16 = arith.constant 0.000000e+00 : f32
    %23 = vector.broadcast %cst_16 : f32 to vector<8x128xf32>
    %24 = arith.maximumf %22, %23 : vector<8x128xf32>
    %25 = arith.truncf %24 : vector<8x128xf32> to vector<8x128xbf16>
    %c0_17 = arith.constant 0 : index
    %c0_18 = arith.constant 0 : index
    %26 = vector.load %arg5[%c0_17, %c0_18] : memref<128x128xbf16, #tpu.memory_space<vmem>>, vector<128x128xbf16>
    %cst_19 = arith.constant dense<0.000000e+00> : vector<8x128xf32>
    %27 = tpu.matmul %25, %26, %cst_19 {dimension_numbers = #tpu.dot_dimension_numbers<[1], [0], [0], [1], [0, 0, 1, 1], [], []>} : vector<8x128xbf16>, vector<128x128xbf16>, vector<8x128xf32> -> vector<8x128xf32>
    %28 = vector.broadcast %3 : vector<1x128xf32> to vector<8x128xf32>
    %29 = arith.addf %27, %28 : vector<8x128xf32>
    %c0_20 = arith.constant 0 : index
    %c0_21 = arith.constant 0 : index
    %30 = vector.load %arg7[%c0_20, %c0_21] : memref<8x128xf32, #tpu.memory_space<vmem>>, vector<8x128xf32>
    tpu.vector_store %arg7[%c0_20, %c0_21], %29 {strides = array<i32>} : memref<8x128xf32, #tpu.memory_space<vmem>>, vector<8x128xf32>,
    return
  }
  func.func @transform_0(%arg0: i32) -> (i32, i32) {
    %c0_i32 = arith.constant 0 : i32
    %c0_i32_0 = arith.constant 0 : i32
    return %arg0, %c0_i32 : i32, i32
  }
  func.func @transform_1(%arg0: i32) -> (i32, i32) {
    %c0_i32 = arith.constant 0 : i32
    %c0_i32_0 = arith.constant 0 : i32
    %c0_i32_1 = arith.constant 0 : i32
    return %c0_i32, %c0_i32_0 : i32, i32
  }
  func.func @transform_2(%arg0: i32) -> (i32, i32) {
    %c0_i32 = arith.constant 0 : i32
    %c0_i32_0 = arith.constant 0 : i32
    %c0_i32_1 = arith.constant 0 : i32
    return %c0_i32, %c0_i32_0 : i32, i32
  }
  func.func @transform_3(%arg0: i32) -> (i32, i32) {
    %c0_i32 = arith.constant 0 : i32
    %c0_i32_0 = arith.constant 0 : i32
    %c0_i32_1 = arith.constant 0 : i32
    return %c0_i32, %c0_i32_0 : i32, i32
  }
  func.func @transform_4(%arg0: i32) -> (i32, i32) {
    %c0_i32 = arith.constant 0 : i32
    %c0_i32_0 = arith.constant 0 : i32
    %c0_i32_1 = arith.constant 0 : i32
    return %c0_i32, %c0_i32_0 : i32, i32
  }
  func.func @transform_5(%arg0: i32) -> (i32, i32) {
    %c0_i32 = arith.constant 0 : i32
    %c0_i32_0 = arith.constant 0 : i32
    %c0_i32_1 = arith.constant 0 : i32
    return %c0_i32, %c0_i32_0 : i32, i32
  }
  func.func @transform_6(%arg0: i32) -> (i32, i32) {
    %c0_i32 = arith.constant 0 : i32
    %c0_i32_0 = arith.constant 0 : i32
    return %arg0, %c0_i32 : i32, i32
  }
}

</mosaic_0001>

<llo_original>
// kernel: custom_network_forward.1
$region0: #{custom_network_forward.1}
  #allocation0 [shape = 'u32[]', space=smem, size = 0x4, offset = 0x4, fixed_abs, tag = 'smem constant byte address 0x4 - core index']
  #allocation1 [shape = 'u32[144,128]{1,0:T(1,128)}', space=vmem, size = 0x12000, scoped, tag = 'internal scratch']
  %s0 = inlined_call_operand.vmem [shape: bf16[8,128], index: 0, kind: input, shape index: {}]
  %s1 = inlined_call_operand.hbm [shape: bf16[128,512], index: 1, kind: input, shape index: {}]
  %s2 = inlined_call_operand.hbm [shape: bf16[512,256], index: 2, kind: input, shape index: {}]
  %s3 = inlined_call_operand.hbm [shape: bf16[256,128], index: 3, kind: input, shape index: {}]
  %s4 = inlined_call_operand.hbm [shape: bf16[128,128], index: 4, kind: input, shape index: {}]
  %s5 = inlined_call_operand.vmem [shape: f32[1,1024], index: 5, kind: input, shape index: {}]
  %s6 = inlined_call_operand.hbm [shape: f32[8,128], index: 6, kind: output, shape index: {}]
  %s7 = sld [smem:[#allocation0]]
  $region50: #{custom_network_forward.1} parent=0
    _
  %s9 = ssub.s32 1, %s7
  %s10 = scalar_select 0, %s9, %s7
  $region1: #{custom_network_forward.1} parent=0
    #allocation2 [shape = 'u8[131072]{0}', space=vmem, size = 0x20000, scoped, tag = 'input window, operand 1, single buffered']
    #allocation3 [shape = 's32[1]{0}', space=sflag, size = 0x4, scoped, tag = 'scoped memory for custom_network_forward.1']
    #allocation4 [shape = 's32[1]{0}', space=sflag, size = 0x4, scoped, tag = 'scoped memory for custom_network_forward.1']
    #allocation5 [shape = 'u8[262144]{0}', space=vmem, size = 0x40000, scoped, tag = 'input window, operand 2, single buffered']
    #allocation6 [shape = 's32[1]{0}', space=sflag, size = 0x4, scoped, tag = 'scoped memory for custom_network_forward.1']
    #allocation7 [shape = 'u8[65536]{0}', space=vmem, size = 0x10000, scoped, tag = 'input window, operand 3, single buffered']
    #allocation8 [shape = 'u8[32768]{0}', space=vmem, size = 0x8000, scoped, tag = 'input window, operand 4, single buffered']
    #allocation9 [shape = 's32[1]{0}', space=sflag, size = 0x4, scoped, tag = 'scoped memory for custom_network_forward.1']
    #allocation10 [shape = 'u8[4096]{0}', space=vmem, size = 0x1000, scoped, tag = 'output window, operand 0, single buffered']
    %11 = vsyncpa [#allocation3], 0
    %12 = vsyncpa [#allocation6], 0
    %13 = vsyncpa [#allocation9], 0
    %14 = vsyncpa [#allocation4], 0
    // Predicated region
    $region2: #{custom_network_forward.1} parent=1 // pred_check
      _
    $region3: #{custom_network_forward.1} parent=1 // pred_check_branch
      %16 = sbr.rel (0) target = $region5
    $region4: #{custom_network_forward.1} parent=1 // pred_region
      _
    $region5: #{custom_network_forward.1} parent=1 // pred_fallthru
      _
    // Predicated region
    $region6: #{custom_network_forward.1} parent=1 // pred_check
      _
    $region7: #{custom_network_forward.1} parent=1 // pred_check_branch
      %18 = sbr.rel (0) target = $region9
    $region8: #{custom_network_forward.1} parent=1 // pred_region
      %s20 = ssub.s32 4096, 4096
      %21 = vsyncadd [#allocation3], %s20
      %s22 = sshll.u32 [#allocation2], 4
      %s23 = int_to_ptr.vmem [resolvable:$true] %s22
      %28 = dma.hbm_to_vmem [thread:$0]  %s1, 4096, %s23, [#allocation3], 256, 256, 16
    $region9: #{custom_network_forward.1} parent=1 // pred_fallthru
      _
    // Predicated region
    $region10: #{custom_network_forward.1} parent=1 // pred_check
      _
    $region11: #{custom_network_forward.1} parent=1 // pred_check_branch
      %30 = sbr.rel (0) target = $region13
    $region12: #{custom_network_forward.1} parent=1 // pred_region
      %s32 = ssub.s32 8192, 8192
      %33 = vsyncadd [#allocation6], %s32
      %s34 = sshll.u32 [#allocation5], 4
      %s35 = int_to_ptr.vmem [resolvable:$true] %s34
      %40 = dma.hbm_to_vmem [thread:$0]  %s2, 8192, %s35, [#allocation6], 128, 128, 8
    $region13: #{custom_network_forward.1} parent=1 // pred_fallthru
      _
    // Predicated region
    $region14: #{custom_network_forward.1} parent=1 // pred_check
      _
    $region15: #{custom_network_forward.1} parent=1 // pred_check_branch
      %42 = sbr.rel (0) target = $region17
    $region16: #{custom_network_forward.1} parent=1 // pred_region
      %s44 = ssub.s32 2048, 2048
      %45 = vsyncadd [#allocation6], %s44
      %s46 = sshll.u32 [#allocation7], 4
      %s47 = int_to_ptr.vmem [resolvable:$true] %s46
      %52 = dma.hbm_to_vmem [thread:$0]  %s3, 2048, %s47, [#allocation6], 64, 64, 4
    $region17: #{custom_network_forward.1} parent=1 // pred_fallthru
      _
    // Predicated region
    $region18: #{custom_network_forward.1} parent=1 // pred_check
      _
    $region19: #{custom_network_forward.1} parent=1 // pred_check_branch
      %54 = sbr.rel (0) target = $region21
    $region20: #{custom_network_forward.1} parent=1 // pred_region
      %s56 = ssub.s32 1024, 1024
      %57 = vsyncadd [#allocation9], %s56
      %s58 = sshll.u32 [#allocation8], 4
      %s59 = int_to_ptr.vmem [resolvable:$true] %s58
      %64 = dma.hbm_to_vmem [thread:$0]  %s4, 1024, %s59, [#allocation9], 64, 64, 4
    $region21: #{custom_network_forward.1} parent=1 // pred_fallthru
      _
    // Predicated region
    $region22: #{custom_network_forward.1} parent=1 // pred_check
      _
    $region23: #{custom_network_forward.1} parent=1 // pred_check_branch
      %66 = sbr.rel (0) target = $region25
    $region24: #{custom_network_forward.1} parent=1 // pred_region
      _
    $region25: #{custom_network_forward.1} parent=1 // pred_fallthru
      _
    // Predicated region
    $region26: #{custom_network_forward.1} parent=1 // pred_check
      _
    $region27: #{custom_network_forward.1} parent=1 // pred_check_branch
      %68 = sbr.rel (0) target = $region29
    $region28: #{custom_network_forward.1} parent=1 // pred_region
      %69 = dma.done [#allocation3], 4096
    $region29: #{custom_network_forward.1} parent=1 // pred_fallthru
      _
    // Predicated region
    $region30: #{custom_network_forward.1} parent=1 // pred_check
      _
    $region31: #{custom_network_forward.1} parent=1 // pred_check_branch
      %71 = sbr.rel (0) target = $region33
    $region32: #{custom_network_forward.1} parent=1 // pred_region
      %72 = dma.done [#allocation6], 8192
    $region33: #{custom_network_forward.1} parent=1 // pred_fallthru
      _
    // Predicated region
    $region34: #{custom_network_forward.1} parent=1 // pred_check
      _
    $region35: #{custom_network_forward.1} parent=1 // pred_check_branch
      %74 = sbr.rel (0) target = $region37
    $region36: #{custom_network_forward.1} parent=1 // pred_region
      %75 = dma.done [#allocation6], 2048
    $region37: #{custom_network_forward.1} parent=1 // pred_fallthru
      _
    // Predicated region
    $region38: #{custom_network_forward.1} parent=1 // pred_check
      _
    $region39: #{custom_network_forward.1} parent=1 // pred_check_branch
      %77 = sbr.rel (0) target = $region41
    $region40: #{custom_network_forward.1} parent=1 // pred_region
      %78 = dma.done [#allocation9], 1024
    $region41: #{custom_network_forward.1} parent=1 // pred_fallthru
      _
    %v80 = vld [vmem:[%s5] sm:$0xf]
    %v81 = vld [vmem:[%s5 + $0x4] sm:$0x3]
    %v82 = vld [vmem:[%s5 + $0x6] sm:$0x1]
    %v83 = vld [vmem:[%s5 + $0x7] sm:$0x1]
    %v84 = vld [vmem:[%s0] sm:$0xf]
    %v85 = vld [vmem:[#allocation2] sm:$0xff]
    %v86 = vld [vmem:[#allocation2 + $0x8] sm:$0xff]
    %v87 = vld [vmem:[#allocation2 + $0x10] sm:$0xff]
    %v88 = vld [vmem:[#allocation2 + $0x18] sm:$0xff]
    %v89 = vld [vmem:[#allocation2 + $0x20] sm:$0xff]
    %v90 = vld [vmem:[#allocation2 + $0x28] sm:$0xff]
    %v91 = vld [vmem:[#allocation2 + $0x30] sm:$0xff]
    %v92 = vld [vmem:[#allocation2 + $0x38] sm:$0xff]
    %v93 = vld [vmem:[#allocation2 + $0x40] sm:$0xff]
    %v94 = vld [vmem:[#allocation2 + $0x48] sm:$0xff]
    %v95 = vld [vmem:[#allocation2 + $0x50] sm:$0xff]
    %v96 = vld [vmem:[#allocation2 + $0x58] sm:$0xff]
    %v97 = vld [vmem:[#allocation2 + $0x60] sm:$0xff]
    %v98 = vld [vmem:[#allocation2 + $0x68] sm:$0xff]
    %v99 = vld [vmem:[#allocation2 + $0x70] sm:$0xff]
    %v100 = vld [vmem:[#allocation2 + $0x78] sm:$0xff]
    %v101 = vld [vmem:[#allocation2 + $0x80] sm:$0xff]
    %v102 = vld [vmem:[#allocation2 + $0x88] sm:$0xff]
    %v103 = vld [vmem:[#allocation2 + $0x90] sm:$0xff]
    %v104 = vld [vmem:[#allocation2 + $0x98] sm:$0xff]
    %v105 = vld [vmem:[#allocation2 + $0xa0] sm:$0xff]
    %v106 = vld [vmem:[#allocation2 + $0xa8] sm:$0xff]
    %v107 = vld [vmem:[#allocation2 + $0xb0] sm:$0xff]
    %v108 = vld [vmem:[#allocation2 + $0xb8] sm:$0xff]
    %v109 = vld [vmem:[#allocation2 + $0xc0] sm:$0xff]
    %v110 = vld [vmem:[#allocation2 + $0xc8] sm:$0xff]
    %v111 = vld [vmem:[#allocation2 + $0xd0] sm:$0xff]
    %v112 = vld [vmem:[#allocation2 + $0xd8] sm:$0xff]
    %v113 = vld [vmem:[#allocation2 + $0xe0] sm:$0xff]
    %v114 = vld [vmem:[#allocation2 + $0xe8] sm:$0xff]
    %v115 = vld [vmem:[#allocation2 + $0xf0] sm:$0xff]
    %v116 = vld [vmem:[#allocation2 + $0xf8] sm:$0xff]
    %v118 = vlaneseq
    %v119 = vshrl.u32 %v118, 7
    %v120 = vsub.s32 0, %v119
    %v121 = vrot.slane %v80, %v120
    %v122 = vlaneseq
    %v123 = vshrl.u32 %v122, 7
    %v124 = vsub.s32 1, %v123
    %v125 = vrot.slane %v80, %v124
    %v126 = vlaneseq
    %v127 = vshrl.u32 %v126, 7
    %v128 = vsub.s32 2, %v127
    %v129 = vrot.slane %v80, %v128
    %v130 = vlaneseq
    %v131 = vshrl.u32 %v130, 7
    %v132 = vsub.s32 3, %v131
    %v133 = vrot.slane %v80, %v132
    %v170 = vunpack.c.l.b16 %v85
    %v171 = vunpack.c.h.b16 %v85
    %v172 = vunpack.c.l.b16 %v86
    %v173 = vunpack.c.h.b16 %v86
    %v174 = vunpack.c.l.b16 %v87
    %v175 = vunpack.c.h.b16 %v87
    %v176 = vunpack.c.l.b16 %v88
    %v177 = vunpack.c.h.b16 %v88
    %v178 = vunpack.c.l.b16 %v89
    %v179 = vunpack.c.h.b16 %v89
    %v180 = vunpack.c.l.b16 %v90
    %v181 = vunpack.c.h.b16 %v90
    %v182 = vunpack.c.l.b16 %v91
    %v183 = vunpack.c.h.b16 %v91
    %v184 = vunpack.c.l.b16 %v92
    %v185 = vunpack.c.h.b16 %v92
    %v186 = vunpack.c.l.b16 %v93
    %v187 = vunpack.c.h.b16 %v93
    %v188 = vunpack.c.l.b16 %v94
    %v189 = vunpack.c.h.b16 %v94
    %v190 = vunpack.c.l.b16 %v95
    %v191 = vunpack.c.h.b16 %v95
    %v192 = vunpack.c.l.b16 %v96
    %v193 = vunpack.c.h.b16 %v96
    %v194 = vunpack.c.l.b16 %v97
    %v195 = vunpack.c.h.b16 %v97
    %v196 = vunpack.c.l.b16 %v98
    %v197 = vunpack.c.h.b16 %v98
    %v198 = vunpack.c.l.b16 %v99
    %v199 = vunpack.c.h.b16 %v99
    %v200 = vunpack.c.l.b16 %v100
    %v201 = vunpack.c.h.b16 %v100
    %v202 = vunpack.c.l.b16 %v101
    %v203 = vunpack.c.h.b16 %v101
    %v204 = vunpack.c.l.b16 %v102
    %v205 = vunpack.c.h.b16 %v102
    %v206 = vunpack.c.l.b16 %v103
    %v207 = vunpack.c.h.b16 %v103
    %v208 = vunpack.c.l.b16 %v104
    %v209 = vunpack.c.h.b16 %v104
    %v210 = vunpack.c.l.b16 %v105
    %v211 = vunpack.c.h.b16 %v105
    %v212 = vunpack.c.l.b16 %v106
    %v213 = vunpack.c.h.b16 %v106
    %v214 = vunpack.c.l.b16 %v107
    %v215 = vunpack.c.h.b16 %v107
    %v216 = vunpack.c.l.b16 %v108
    %v217 = vunpack.c.h.b16 %v108
    %v218 = vunpack.c.l.b16 %v109
    %v219 = vunpack.c.h.b16 %v109
    %v220 = vunpack.c.l.b16 %v110
    %v221 = vunpack.c.h.b16 %v110
    %v222 = vunpack.c.l.b16 %v111
    %v223 = vunpack.c.h.b16 %v111
    %v224 = vunpack.c.l.b16 %v112
    %v225 = vunpack.c.h.b16 %v112
    %v226 = vunpack.c.l.b16 %v113
    %v227 = vunpack.c.h.b16 %v113
    %v228 = vunpack.c.l.b16 %v114
    %v229 = vunpack.c.h.b16 %v114
    %v230 = vunpack.c.l.b16 %v115
    %v231 = vunpack.c.h.b16 %v115
    %v232 = vunpack.c.l.b16 %v116
    %v233 = vunpack.c.h.b16 %v116
    %v234 = vpack.c.b16 %v174, %v170
    %v235 = vpack.c.b16 %v175, %v171
    %v236 = vpack.c.b16 %v176, %v172
    %v237 = vpack.c.b16 %v177, %v173
    %v238 = vpack.c.b16 %v182, %v178
    %v239 = vpack.c.b16 %v183, %v179
    %v240 = vpack.c.b16 %v184, %v180
    %v241 = vpack.c.b16 %v185, %v181
    %v242 = vpack.c.b16 %v190, %v186
    %v243 = vpack.c.b16 %v191, %v187
    %v244 = vpack.c.b16 %v192, %v188
    %v245 = vpack.c.b16 %v193, %v189
    %v246 = vpack.c.b16 %v198, %v194
    %v247 = vpack.c.b16 %v199, %v195
    %v248 = vpack.c.b16 %v200, %v196
    %v249 = vpack.c.b16 %v201, %v197
    %v250 = vpack.c.b16 %v206, %v202
    %v251 = vpack.c.b16 %v207, %v203
    %v252 = vpack.c.b16 %v208, %v204
    %v253 = vpack.c.b16 %v209, %v205
    %v254 = vpack.c.b16 %v214, %v210
    %v255 = vpack.c.b16 %v215, %v211
    %v256 = vpack.c.b16 %v216, %v212
    %v257 = vpack.c.b16 %v217, %v213
    %v258 = vpack.c.b16 %v222, %v218
    %v259 = vpack.c.b16 %v223, %v219
    %v260 = vpack.c.b16 %v224, %v220
    %v261 = vpack.c.b16 %v225, %v221
    %v262 = vpack.c.b16 %v230, %v226
    %v263 = vpack.c.b16 %v231, %v227
    %v264 = vpack.c.b16 %v232, %v228
    %v265 = vpack.c.b16 %v233, %v229
    %298 = vmatprep.subr.bf16.mxu0 %v263
    %299 = vmatpush1.bf16.msra.mxu0 %v262
    %300 = vmatprep.subr.bf16.mxu0 %v259
    %301 = vmatpush1.bf16.msra.mxu0 %v258
    %302 = vmatprep.subr.bf16.mxu0 %v255
    %303 = vmatpush1.bf16.msra.mxu0 %v254
    %304 = vmatprep.subr.bf16.mxu0 %v251
    %305 = vmatpush1.bf16.msra.mxu0 %v250
    %306 = vmatprep.subr.bf16.mxu0 %v247
    %307 = vmatpush1.bf16.msra.mxu0 %v246
    %308 = vmatprep.subr.bf16.mxu0 %v243
    %309 = vmatpush1.bf16.msra.mxu0 %v242
    %310 = vmatprep.subr.bf16.mxu0 %v239
    %311 = vmatpush1.bf16.msra.mxu0 %v238
    %312 = vmatprep.subr.bf16.mxu0 %v235
    %313 = vmatpush1.bf16.msra.mxu0 %v234
    %314 = vmatprep.subr.bf16.mxu0 0
    %315 = vmatpush2.bf16.msra.mxu0 0
    %316 = vmatprep.subr.bf16.mxu0 0
    %317 = vmatpush2.bf16.msra.mxu0 0
    %318 = vmatprep.subr.bf16.mxu0 0
    %319 = vmatpush2.bf16.msra.mxu0 0
    %320 = vmatprep.subr.bf16.mxu0 0
    %321 = vmatpush2.bf16.msra.mxu0 0
    %322 = vmatprep.subr.bf16.mxu0 0
    %323 = vmatpush2.bf16.msra.mxu0 0
    %324 = vmatprep.subr.bf16.mxu0 0
    %325 = vmatpush2.bf16.msra.mxu0 0
    %326 = vmatprep.subr.bf16.mxu0 0
    %327 = vmatpush2.bf16.msra.mxu0 0
    %328 = vmatprep.subr.bf16.mxu0 0
    %329 = vmatpush2.bf16.msra.mxu0 0
    %330 = vmatprep.mubr.bf16.mxu0 0
    %331 = vmatmul.mubr.bf16.gmra.mxu0 %v84
    %v332 = vpop.f32.mrf.mxu0
    %v333 = vadd.f32 %v121, %v332
    %v334 = vpop.f32.mrf.mxu0
    %v335 = vadd.f32 %v125, %v334
    %v336 = vpop.f32.mrf.mxu0
    %v337 = vpop.f32.mrf.mxu0
    %338 = vdwg.mxu0
    %339 = vmatprep.subr.bf16.mxu0 %v265
    %340 = vmatpush1.bf16.msra.mxu0 %v264
    %341 = vmatprep.subr.bf16.mxu0 %v261
    %342 = vmatpush1.bf16.msra.mxu0 %v260
    %343 = vmatprep.subr.bf16.mxu0 %v257
    %344 = vmatpush1.bf16.msra.mxu0 %v256
    %345 = vmatprep.subr.bf16.mxu0 %v253
    %346 = vmatpush1.bf16.msra.mxu0 %v252
    %347 = vmatprep.subr.bf16.mxu0 %v249
    %348 = vmatpush1.bf16.msra.mxu0 %v248
    %349 = vmatprep.subr.bf16.mxu0 %v245
    %350 = vmatpush1.bf16.msra.mxu0 %v244
    %351 = vmatprep.subr.bf16.mxu0 %v241
    %352 = vmatpush1.bf16.msra.mxu0 %v240
    %353 = vmatprep.subr.bf16.mxu0 %v237
    %354 = vmatpush1.bf16.msra.mxu0 %v236
    %355 = vmatprep.subr.bf16.mxu0 0
    %356 = vmatpush2.bf16.msra.mxu0 0
    %357 = vmatprep.subr.bf16.mxu0 0
    %358 = vmatpush2.bf16.msra.mxu0 0
    %359 = vmatprep.subr.bf16.mxu0 0
    %360 = vmatpush2.bf16.msra.mxu0 0
    %361 = vmatprep.subr.bf16.mxu0 0
    %362 = vmatpush2.bf16.msra.mxu0 0
    %363 = vmatprep.subr.bf16.mxu0 0
    %364 = vmatpush2.bf16.msra.mxu0 0
    %365 = vmatprep.subr.bf16.mxu0 0
    %366 = vmatpush2.bf16.msra.mxu0 0
    %367 = vmatprep.subr.bf16.mxu0 0
    %368 = vmatpush2.bf16.msra.mxu0 0
    %369 = vmatprep.subr.bf16.mxu0 0
    %370 = vmatpush2.bf16.msra.mxu0 0
    %371 = vmatprep.mubr.bf16.mxu0 0
    %372 = vmatmul.mubr.bf16.gmra.mxu0 %v84
    %v373 = vpop.f32.mrf.mxu0
    %v374 = vadd.f32 %v129, %v373
    %v375 = vpop.f32.mrf.mxu0
    %v376 = vadd.f32 %v133, %v375
    %v377 = vpop.f32.mrf.mxu0
    %v378 = vpop.f32.mrf.mxu0
    %379 = vdwg.mxu0
    %v380 = vmax.f32 %v333, 0.0
    %v381 = vmax.f32 %v335, 0.0
    %v382 = vmax.f32 %v374, 0.0
    %v383 = vmax.f32 %v376, 0.0
    %v384 = vpack.c.bf16 %v380, %v380
    %v385 = vpack.c.bf16 %v381, %v381
    %v386 = vpack.c.bf16 %v382, %v382
    %v387 = vpack.c.bf16 %v383, %v383
    %v388 = vld [vmem:[#allocation5] sm:$0xff]
    %v389 = vld [vmem:[#allocation5 + $0x8] sm:$0xff]
    %v390 = vld [vmem:[#allocation5 + $0x10] sm:$0xff]
    %v391 = vld [vmem:[#allocation5 + $0x18] sm:$0xff]
    %v392 = vld [vmem:[#allocation5 + $0x20] sm:$0xff]
    %v393 = vld [vmem:[#allocation5 + $0x28] sm:$0xff]
    %v394 = vld [vmem:[#allocation5 + $0x30] sm:$0xff]
    %v395 = vld [vmem:[#allocation5 + $0x38] sm:$0xff]
    %v396 = vld [vmem:[#allocation5 + $0x40] sm:$0xff]
    %v397 = vld [vmem:[#allocation5 + $0x48] sm:$0xff]
    %v398 = vld [vmem:[#allocation5 + $0x50] sm:$0xff]
    %v399 = vld [vmem:[#allocation5 + $0x58] sm:$0xff]
    %v400 = vld [vmem:[#allocation5 + $0x60] sm:$0xff]
    %v401 = vld [vmem:[#allocation5 + $0x68] sm:$0xff]
    %v402 = vld [vmem:[#allocation5 + $0x70] sm:$0xff]
    %v403 = vld [vmem:[#allocation5 + $0x78] sm:$0xff]
    %v404 = vld [vmem:[#allocation5 + $0x80] sm:$0xff]
    %v405 = vld [vmem:[#allocation5 + $0x88] sm:$0xff]
    %v406 = vld [vmem:[#allocation5 + $0x90] sm:$0xff]
    %v407 = vld [vmem:[#allocation5 + $0x98] sm:$0xff]
    %v408 = vld [vmem:[#allocation5 + $0xa0] sm:$0xff]
    %v409 = vld [vmem:[#allocation5 + $0xa8] sm:$0xff]
    %v410 = vld [vmem:[#allocation5 + $0xb0] sm:$0xff]
    %v411 = vld [vmem:[#allocation5 + $0xb8] sm:$0xff]
    %v412 = vld [vmem:[#allocation5 + $0xc0] sm:$0xff]
    %v413 = vld [vmem:[#allocation5 + $0xc8] sm:$0xff]
    %v414 = vld [vmem:[#allocation5 + $0xd0] sm:$0xff]
    %v415 = vld [vmem:[#allocation5 + $0xd8] sm:$0xff]
    %v416 = vld [vmem:[#allocation5 + $0xe0] sm:$0xff]
    %v417 = vld [vmem:[#allocation5 + $0xe8] sm:$0xff]
    %v418 = vld [vmem:[#allocation5 + $0xf0] sm:$0xff]
    %v419 = vld [vmem:[#allocation5 + $0xf8] sm:$0xff]
    %v420 = vld [vmem:[#allocation5 + $0x100] sm:$0xff]
    %v421 = vld [vmem:[#allocation5 + $0x108] sm:$0xff]
    %v422 = vld [vmem:[#allocation5 + $0x110] sm:$0xff]
    %v423 = vld [vmem:[#allocation5 + $0x118] sm:$0xff]
    %v424 = vld [vmem:[#allocation5 + $0x120] sm:$0xff]
    %v425 = vld [vmem:[#allocation5 + $0x128] sm:$0xff]
    %v426 = vld [vmem:[#allocation5 + $0x130] sm:$0xff]
    %v427 = vld [vmem:[#allocation5 + $0x138] sm:$0xff]
    %v428 = vld [vmem:[#allocation5 + $0x140] sm:$0xff]
    %v429 = vld [vmem:[#allocation5 + $0x148] sm:$0xff]
    %v430 = vld [vmem:[#allocation5 + $0x150] sm:$0xff]
    %v431 = vld [vmem:[#allocation5 + $0x158] sm:$0xff]
    %v432 = vld [vmem:[#allocation5 + $0x160] sm:$0xff]
    %v433 = vld [vmem:[#allocation5 + $0x168] sm:$0xff]
    %v434 = vld [vmem:[#allocation5 + $0x170] sm:$0xff]
    %v435 = vld [vmem:[#allocation5 + $0x178] sm:$0xff]
    %v436 = vld [vmem:[#allocation5 + $0x180] sm:$0xff]
    %v437 = vld [vmem:[#allocation5 + $0x188] sm:$0xff]
    %v438 = vld [vmem:[#allocation5 + $0x190] sm:$0xff]
    %v439 = vld [vmem:[#allocation5 + $0x198] sm:$0xff]
    %v440 = vld [vmem:[#allocation5 + $0x1a0] sm:$0xff]
    %v441 = vld [vmem:[#allocation5 + $0x1a8] sm:$0xff]
    %v442 = vld [vmem:[#allocation5 + $0x1b0] sm:$0xff]
    %v443 = vld [vmem:[#allocation5 + $0x1b8] sm:$0xff]
    %v444 = vld [vmem:[#allocation5 + $0x1c0] sm:$0xff]
    %v445 = vld [vmem:[#allocation5 + $0x1c8] sm:$0xff]
    %v446 = vld [vmem:[#allocation5 + $0x1d0] sm:$0xff]
    %v447 = vld [vmem:[#allocation5 + $0x1d8] sm:$0xff]
    %v448 = vld [vmem:[#allocation5 + $0x1e0] sm:$0xff]
    %v449 = vld [vmem:[#allocation5 + $0x1e8] sm:$0xff]
    %v450 = vld [vmem:[#allocation5 + $0x1f0] sm:$0xff]
    %v451 = vld [vmem:[#allocation5 + $0x1f8] sm:$0xff]
    %v453 = vlaneseq
    %v454 = vshrl.u32 %v453, 7
    %v455 = vsub.s32 0, %v454
    %v456 = vrot.slane %v81, %v455
    %v457 = vlaneseq
    %v458 = vshrl.u32 %v457, 7
    %v459 = vsub.s32 1, %v458
    %v460 = vrot.slane %v81, %v459
    %v527 = vunpack.c.l.b16 %v388
    %v528 = vunpack.c.h.b16 %v388
    %v529 = vunpack.c.l.b16 %v389
    %v530 = vunpack.c.h.b16 %v389
    %v531 = vunpack.c.l.b16 %v390
    %v532 = vunpack.c.h.b16 %v390
    %v533 = vunpack.c.l.b16 %v391
    %v534 = vunpack.c.h.b16 %v391
    %v535 = vunpack.c.l.b16 %v392
    %v536 = vunpack.c.h.b16 %v392
    %v537 = vunpack.c.l.b16 %v393
    %v538 = vunpack.c.h.b16 %v393
    %v539 = vunpack.c.l.b16 %v394
    %v540 = vunpack.c.h.b16 %v394
    %v541 = vunpack.c.l.b16 %v395
    %v542 = vunpack.c.h.b16 %v395
    %v543 = vunpack.c.l.b16 %v396
    %v544 = vunpack.c.h.b16 %v396
    %v545 = vunpack.c.l.b16 %v397
    %v546 = vunpack.c.h.b16 %v397
    %v547 = vunpack.c.l.b16 %v398
    %v548 = vunpack.c.h.b16 %v398
    %v549 = vunpack.c.l.b16 %v399
    %v550 = vunpack.c.h.b16 %v399
    %v551 = vunpack.c.l.b16 %v400
    %v552 = vunpack.c.h.b16 %v400
    %v553 = vunpack.c.l.b16 %v401
    %v554 = vunpack.c.h.b16 %v401
    %v555 = vunpack.c.l.b16 %v402
    %v556 = vunpack.c.h.b16 %v402
    %v557 = vunpack.c.l.b16 %v403
    %v558 = vunpack.c.h.b16 %v403
    %v559 = vunpack.c.l.b16 %v404
    %v560 = vunpack.c.h.b16 %v404
    %v561 = vunpack.c.l.b16 %v405
    %v562 = vunpack.c.h.b16 %v405
    %v563 = vunpack.c.l.b16 %v406
    %v564 = vunpack.c.h.b16 %v406
    %v565 = vunpack.c.l.b16 %v407
    %v566 = vunpack.c.h.b16 %v407
    %v567 = vunpack.c.l.b16 %v408
    %v568 = vunpack.c.h.b16 %v408
    %v569 = vunpack.c.l.b16 %v409
    %v570 = vunpack.c.h.b16 %v409
    %v571 = vunpack.c.l.b16 %v410
    %v572 = vunpack.c.h.b16 %v410
    %v573 = vunpack.c.l.b16 %v411
    %v574 = vunpack.c.h.b16 %v411
    %v575 = vunpack.c.l.b16 %v412
    %v576 = vunpack.c.h.b16 %v412
    %v577 = vunpack.c.l.b16 %v413
    %v578 = vunpack.c.h.b16 %v413
    %v579 = vunpack.c.l.b16 %v414
    %v580 = vunpack.c.h.b16 %v414
    %v581 = vunpack.c.l.b16 %v415
    %v582 = vunpack.c.h.b16 %v415
    %v583 = vunpack.c.l.b16 %v416
    %v584 = vunpack.c.h.b16 %v416
    %v585 = vunpack.c.l.b16 %v417
    %v586 = vunpack.c.h.b16 %v417
    %v587 = vunpack.c.l.b16 %v418
    %v588 = vunpack.c.h.b16 %v418
    %v589 = vunpack.c.l.b16 %v419
    %v590 = vunpack.c.h.b16 %v419
    %v591 = vunpack.c.l.b16 %v420
    %v592 = vunpack.c.h.b16 %v420
    %v593 = vunpack.c.l.b16 %v421
    %v594 = vunpack.c.h.b16 %v421
    %v595 = vunpack.c.l.b16 %v422
    %v596 = vunpack.c.h.b16 %v422
    %v597 = vunpack.c.l.b16 %v423
    %v598 = vunpack.c.h.b16 %v423
    %v599 = vunpack.c.l.b16 %v424
    %v600 = vunpack.c.h.b16 %v424
    %v601 = vunpack.c.l.b16 %v425
    %v602 = vunpack.c.h.b16 %v425
    %v603 = vunpack.c.l.b16 %v426
    %v604 = vunpack.c.h.b16 %v426
    %v605 = vunpack.c.l.b16 %v427
    %v606 = vunpack.c.h.b16 %v427
    %v607 = vunpack.c.l.b16 %v428
    %v608 = vunpack.c.h.b16 %v428
    %v609 = vunpack.c.l.b16 %v429
    %v610 = vunpack.c.h.b16 %v429
    %v611 = vunpack.c.l.b16 %v430
    %v612 = vunpack.c.h.b16 %v430
    %v613 = vunpack.c.l.b16 %v431
    %v614 = vunpack.c.h.b16 %v431
    %v615 = vunpack.c.l.b16 %v432
    %v616 = vunpack.c.h.b16 %v432
    %v617 = vunpack.c.l.b16 %v433
    %v618 = vunpack.c.h.b16 %v433
    %v619 = vunpack.c.l.b16 %v434
    %v620 = vunpack.c.h.b16 %v434
    %v621 = vunpack.c.l.b16 %v435
    %v622 = vunpack.c.h.b16 %v435
    %v623 = vunpack.c.l.b16 %v436
    %v624 = vunpack.c.h.b16 %v436
    %v625 = vunpack.c.l.b16 %v437
    %v626 = vunpack.c.h.b16 %v437
    %v627 = vunpack.c.l.b16 %v438
    %v628 = vunpack.c.h.b16 %v438
    %v629 = vunpack.c.l.b16 %v439
    %v630 = vunpack.c.h.b16 %v439
    %v631 = vunpack.c.l.b16 %v440
    %v632 = vunpack.c.h.b16 %v440
    %v633 = vunpack.c.l.b16 %v441
    %v634 = vunpack.c.h.b16 %v441
    %v635 = vunpack.c.l.b16 %v442
    %v636 = vunpack.c.h.b16 %v442
    %v637 = vunpack.c.l.b16 %v443
    %v638 = vunpack.c.h.b16 %v443
    %v639 = vunpack.c.l.b16 %v444
    %v640 = vunpack.c.h.b16 %v444
    %v641 = vunpack.c.l.b16 %v445
    %v642 = vunpack.c.h.b16 %v445
    %v643 = vunpack.c.l.b16 %v446
    %v644 = vunpack.c.h.b16 %v446
    %v645 = vunpack.c.l.b16 %v447
    %v646 = vunpack.c.h.b16 %v447
    %v647 = vunpack.c.l.b16 %v448
    %v648 = vunpack.c.h.b16 %v448
    %v649 = vunpack.c.l.b16 %v449
    %v650 = vunpack.c.h.b16 %v449
    %v651 = vunpack.c.l.b16 %v450
    %v652 = vunpack.c.h.b16 %v450
    %v653 = vunpack.c.l.b16 %v451
    %v654 = vunpack.c.h.b16 %v451
    %v655 = vpack.c.b16 %v529, %v527
    %v656 = vpack.c.b16 %v530, %v528
    %v657 = vpack.c.b16 %v533, %v531
    %v658 = vpack.c.b16 %v534, %v532
    %v659 = vpack.c.b16 %v537, %v535
    %v660 = vpack.c.b16 %v538, %v536
    %v661 = vpack.c.b16 %v541, %v539
    %v662 = vpack.c.b16 %v542, %v540
    %v663 = vpack.c.b16 %v545, %v543
    %v664 = vpack.c.b16 %v546, %v544
    %v665 = vpack.c.b16 %v549, %v547
    %v666 = vpack.c.b16 %v550, %v548
    %v667 = vpack.c.b16 %v553, %v551
    %v668 = vpack.c.b16 %v554, %v552
    %v669 = vpack.c.b16 %v557, %v555
    %v670 = vpack.c.b16 %v558, %v556
    %v671 = vpack.c.b16 %v561, %v559
    %v672 = vpack.c.b16 %v562, %v560
    %v673 = vpack.c.b16 %v565, %v563
    %v674 = vpack.c.b16 %v566, %v564
    %v675 = vpack.c.b16 %v569, %v567
    %v676 = vpack.c.b16 %v570, %v568
    %v677 = vpack.c.b16 %v573, %v571
    %v678 = vpack.c.b16 %v574, %v572
    %v679 = vpack.c.b16 %v577, %v575
    %v680 = vpack.c.b16 %v578, %v576
    %v681 = vpack.c.b16 %v581, %v579
    %v682 = vpack.c.b16 %v582, %v580
    %v683 = vpack.c.b16 %v585, %v583
    %v684 = vpack.c.b16 %v586, %v584
    %v685 = vpack.c.b16 %v589, %v587
    %v686 = vpack.c.b16 %v590, %v588
    %v687 = vpack.c.b16 %v593, %v591
    %v688 = vpack.c.b16 %v594, %v592
    %v689 = vpack.c.b16 %v597, %v595
    %v690 = vpack.c.b16 %v598, %v596
    %v691 = vpack.c.b16 %v601, %v599
    %v692 = vpack.c.b16 %v602, %v600
    %v693 = vpack.c.b16 %v605, %v603
    %v694 = vpack.c.b16 %v606, %v604
    %v695 = vpack.c.b16 %v609, %v607
    %v696 = vpack.c.b16 %v610, %v608
    %v697 = vpack.c.b16 %v613, %v611
    %v698 = vpack.c.b16 %v614, %v612
    %v699 = vpack.c.b16 %v617, %v615
    %v700 = vpack.c.b16 %v618, %v616
    %v701 = vpack.c.b16 %v621, %v619
    %v702 = vpack.c.b16 %v622, %v620
    %v703 = vpack.c.b16 %v625, %v623
    %v704 = vpack.c.b16 %v626, %v624
    %v705 = vpack.c.b16 %v629, %v627
    %v706 = vpack.c.b16 %v630, %v628
    %v707 = vpack.c.b16 %v633, %v631
    %v708 = vpack.c.b16 %v634, %v632
    %v709 = vpack.c.b16 %v637, %v635
    %v710 = vpack.c.b16 %v638, %v636
    %v711 = vpack.c.b16 %v641, %v639
    %v712 = vpack.c.b16 %v642, %v640
    %v713 = vpack.c.b16 %v645, %v643
    %v714 = vpack.c.b16 %v646, %v644
    %v715 = vpack.c.b16 %v649, %v647
    %v716 = vpack.c.b16 %v650, %v648
    %v717 = vpack.c.b16 %v653, %v651
    %v718 = vpack.c.b16 %v654, %v652
    %783 = vmatprep.subr.bf16.mxu0 %v670
    %784 = vmatpush1.bf16.msra.mxu0 %v669
    %785 = vmatprep.subr.bf16.mxu0 %v668
    %786 = vmatpush1.bf16.msra.mxu0 %v667
    %787 = vmatprep.subr.bf16.mxu0 %v666
    %788 = vmatpush1.bf16.msra.mxu0 %v665
    %789 = vmatprep.subr.bf16.mxu0 %v664
    %790 = vmatpush1.bf16.msra.mxu0 %v663
    %791 = vmatprep.subr.bf16.mxu0 %v662
    %792 = vmatpush1.bf16.msra.mxu0 %v661
    %793 = vmatprep.subr.bf16.mxu0 %v660
    %794 = vmatpush1.bf16.msra.mxu0 %v659
    %795 = vmatprep.subr.bf16.mxu0 %v658
    %796 = vmatpush1.bf16.msra.mxu0 %v657
    %797 = vmatprep.subr.bf16.mxu0 %v656
    %798 = vmatpush1.bf16.msra.mxu0 %v655
    %799 = vmatprep.subr.bf16.mxu0 %v686
    %800 = vmatpush2.bf16.msra.mxu0 %v685
    %801 = vmatprep.subr.bf16.mxu0 %v684
    %802 = vmatpush2.bf16.msra.mxu0 %v683
    %803 = vmatprep.subr.bf16.mxu0 %v682
    %804 = vmatpush2.bf16.msra.mxu0 %v681
    %805 = vmatprep.subr.bf16.mxu0 %v680
    %806 = vmatpush2.bf16.msra.mxu0 %v679
    %807 = vmatprep.subr.bf16.mxu0 %v678
    %808 = vmatpush2.bf16.msra.mxu0 %v677
    %809 = vmatprep.subr.bf16.mxu0 %v676
    %810 = vmatpush2.bf16.msra.mxu0 %v675
    %811 = vmatprep.subr.bf16.mxu0 %v674
    %812 = vmatpush2.bf16.msra.mxu0 %v673
    %813 = vmatprep.subr.bf16.mxu0 %v672
    %814 = vmatpush2.bf16.msra.mxu0 %v671
    %815 = vmatprep.mubr.bf16.mxu0 %v385
    %816 = vmatmul.mubr.bf16.gmra.mxu0 %v384
    %v817 = vpop.f32.mrf.mxu0
    %v818 = vadd.f32 %v456, %v817
    %v819 = vpop.f32.mrf.mxu0
    %v820 = vadd.f32 %v460, %v819
    %v821 = vpop.f32.mrf.mxu0
    %v822 = vpop.f32.mrf.mxu0
    %823 = vdwg.mxu0
    %824 = vmatprep.subr.bf16.mxu0 %v702
    %825 = vmatpush1.bf16.msra.mxu0 %v701
    %826 = vmatprep.subr.bf16.mxu0 %v700
    %827 = vmatpush1.bf16.msra.mxu0 %v699
    %828 = vmatprep.subr.bf16.mxu0 %v698
    %829 = vmatpush1.bf16.msra.mxu0 %v697
    %830 = vmatprep.subr.bf16.mxu0 %v696
    %831 = vmatpush1.bf16.msra.mxu0 %v695
    %832 = vmatprep.subr.bf16.mxu0 %v694
    %833 = vmatpush1.bf16.msra.mxu0 %v693
    %834 = vmatprep.subr.bf16.mxu0 %v692
    %835 = vmatpush1.bf16.msra.mxu0 %v691
    %836 = vmatprep.subr.bf16.mxu0 %v690
    %837 = vmatpush1.bf16.msra.mxu0 %v689
    %838 = vmatprep.subr.bf16.mxu0 %v688
    %839 = vmatpush1.bf16.msra.mxu0 %v687
    %840 = vmatprep.subr.bf16.mxu0 %v718
    %841 = vmatpush2.bf16.msra.mxu0 %v717
    %842 = vmatprep.subr.bf16.mxu0 %v716
    %843 = vmatpush2.bf16.msra.mxu0 %v715
    %844 = vmatprep.subr.bf16.mxu0 %v714
    %845 = vmatpush2.bf16.msra.mxu0 %v713
    %846 = vmatprep.subr.bf16.mxu0 %v712
    %847 = vmatpush2.bf16.msra.mxu0 %v711
    %848 = vmatprep.subr.bf16.mxu0 %v710
    %849 = vmatpush2.bf16.msra.mxu0 %v709
    %850 = vmatprep.subr.bf16.mxu0 %v708
    %851 = vmatpush2.bf16.msra.mxu0 %v707
    %852 = vmatprep.subr.bf16.mxu0 %v706
    %853 = vmatpush2.bf16.msra.mxu0 %v705
    %854 = vmatprep.subr.bf16.mxu0 %v704
    %855 = vmatpush2.bf16.msra.mxu0 %v703
    %856 = vmatprep.mubr.bf16.mxu0 %v387
    %857 = vmatmul.mubr.bf16.gmra.mxu0 %v386
    %v858 = vpop.f32.mrf.mxu0
    %v859 = vadd.f32 %v818, %v858
    %v860 = vpop.f32.mrf.mxu0
    %v861 = vadd.f32 %v820, %v860
    %v862 = vpop.f32.mrf.mxu0
    %v863 = vpop.f32.mrf.mxu0
    %864 = vdwg.mxu0
    %v865 = vmax.f32 %v859, 0.0
    %v866 = vmax.f32 %v861, 0.0
    %v867 = vpack.c.bf16 %v865, %v865
    %v868 = vpack.c.bf16 %v866, %v866
    %v869 = vld [vmem:[#allocation7] sm:$0xf]
    %v870 = vld [vmem:[#allocation7 + $0x4] sm:$0xf]
    %v871 = vld [vmem:[#allocation7 + $0x8] sm:$0xf]
    %v872 = vld [vmem:[#allocation7 + $0xc] sm:$0xf]
    %v873 = vld [vmem:[#allocation7 + $0x10] sm:$0xf]
    %v874 = vld [vmem:[#allocation7 + $0x14] sm:$0xf]
    %v875 = vld [vmem:[#allocation7 + $0x18] sm:$0xf]
    %v876 = vld [vmem:[#allocation7 + $0x1c] sm:$0xf]
    %v877 = vld [vmem:[#allocation7 + $0x20] sm:$0xf]
    %v878 = vld [vmem:[#allocation7 + $0x24] sm:$0xf]
    %v879 = vld [vmem:[#allocation7 + $0x28] sm:$0xf]
    %v880 = vld [vmem:[#allocation7 + $0x2c] sm:$0xf]
    %v881 = vld [vmem:[#allocation7 + $0x30] sm:$0xf]
    %v882 = vld [vmem:[#allocation7 + $0x34] sm:$0xf]
    %v883 = vld [vmem:[#allocation7 + $0x38] sm:$0xf]
    %v884 = vld [vmem:[#allocation7 + $0x3c] sm:$0xf]
    %v885 = vld [vmem:[#allocation7 + $0x40] sm:$0xf]
    %v886 = vld [vmem:[#allocation7 + $0x44] sm:$0xf]
    %v887 = vld [vmem:[#allocation7 + $0x48] sm:$0xf]
    %v888 = vld [vmem:[#allocation7 + $0x4c] sm:$0xf]
    %v889 = vld [vmem:[#allocation7 + $0x50] sm:$0xf]
    %v890 = vld [vmem:[#allocation7 + $0x54] sm:$0xf]
    %v891 = vld [vmem:[#allocation7 + $0x58] sm:$0xf]
    %v892 = vld [vmem:[#allocation7 + $0x5c] sm:$0xf]
    %v893 = vld [vmem:[#allocation7 + $0x60] sm:$0xf]
    %v894 = vld [vmem:[#allocation7 + $0x64] sm:$0xf]
    %v895 = vld [vmem:[#allocation7 + $0x68] sm:$0xf]
    %v896 = vld [vmem:[#allocation7 + $0x6c] sm:$0xf]
    %v897 = vld [vmem:[#allocation7 + $0x70] sm:$0xf]
    %v898 = vld [vmem:[#allocation7 + $0x74] sm:$0xf]
    %v899 = vld [vmem:[#allocation7 + $0x78] sm:$0xf]
    %v900 = vld [vmem:[#allocation7 + $0x7c] sm:$0xf]
    %v902 = vlaneseq
    %v903 = vshrl.u32 %v902, 7
    %v904 = vsub.s32 0, %v903
    %v905 = vrot.slane %v82, %v904
    %v939 = vunpack.c.l.b16 %v869
    %v940 = vunpack.c.l.b16 %v870
    %v941 = vunpack.c.l.b16 %v871
    %v942 = vunpack.c.l.b16 %v872
    %v943 = vunpack.c.l.b16 %v873
    %v944 = vunpack.c.l.b16 %v874
    %v945 = vunpack.c.l.b16 %v875
    %v946 = vunpack.c.l.b16 %v876
    %v947 = vunpack.c.l.b16 %v877
    %v948 = vunpack.c.l.b16 %v878
    %v949 = vunpack.c.l.b16 %v879
    %v950 = vunpack.c.l.b16 %v880
    %v951 = vunpack.c.l.b16 %v881
    %v952 = vunpack.c.l.b16 %v882
    %v953 = vunpack.c.l.b16 %v883
    %v954 = vunpack.c.l.b16 %v884
    %v955 = vunpack.c.l.b16 %v885
    %v956 = vunpack.c.l.b16 %v886
    %v957 = vunpack.c.l.b16 %v887
    %v958 = vunpack.c.l.b16 %v888
    %v959 = vunpack.c.l.b16 %v889
    %v960 = vunpack.c.l.b16 %v890
    %v961 = vunpack.c.l.b16 %v891
    %v962 = vunpack.c.l.b16 %v892
    %v963 = vunpack.c.l.b16 %v893
    %v964 = vunpack.c.l.b16 %v894
    %v965 = vunpack.c.l.b16 %v895
    %v966 = vunpack.c.l.b16 %v896
    %v967 = vunpack.c.l.b16 %v897
    %v968 = vunpack.c.l.b16 %v898
    %v969 = vunpack.c.l.b16 %v899
    %v970 = vunpack.c.l.b16 %v900
    %v971 = vpack.c.b16 %v940, %v939
    %v972 = vpack.c.b16 %v942, %v941
    %v973 = vpack.c.b16 %v944, %v943
    %v974 = vpack.c.b16 %v946, %v945
    %v975 = vpack.c.b16 %v948, %v947
    %v976 = vpack.c.b16 %v950, %v949
    %v977 = vpack.c.b16 %v952, %v951
    %v978 = vpack.c.b16 %v954, %v953
    %v979 = vpack.c.b16 %v956, %v955
    %v980 = vpack.c.b16 %v958, %v957
    %v981 = vpack.c.b16 %v960, %v959
    %v982 = vpack.c.b16 %v962, %v961
    %v983 = vpack.c.b16 %v964, %v963
    %v984 = vpack.c.b16 %v966, %v965
    %v985 = vpack.c.b16 %v968, %v967
    %v986 = vpack.c.b16 %v970, %v969
    %1003 = vmatprep.subr.bf16.mxu0 0
    %1004 = vmatpush1.bf16.msra.mxu0 %v978
    %1005 = vmatprep.subr.bf16.mxu0 0
    %1006 = vmatpush1.bf16.msra.mxu0 %v977
    %1007 = vmatprep.subr.bf16.mxu0 0
    %1008 = vmatpush1.bf16.msra.mxu0 %v976
    %1009 = vmatprep.subr.bf16.mxu0 0
    %1010 = vmatpush1.bf16.msra.mxu0 %v975
    %1011 = vmatprep.subr.bf16.mxu0 0
    %1012 = vmatpush1.bf16.msra.mxu0 %v974
    %1013 = vmatprep.subr.bf16.mxu0 0
    %1014 = vmatpush1.bf16.msra.mxu0 %v973
    %1015 = vmatprep.subr.bf16.mxu0 0
    %1016 = vmatpush1.bf16.msra.mxu0 %v972
    %1017 = vmatprep.subr.bf16.mxu0 0
    %1018 = vmatpush1.bf16.msra.mxu0 %v971
    %1019 = vmatprep.subr.bf16.mxu0 0
    %1020 = vmatpush2.bf16.msra.mxu0 %v986
    %1021 = vmatprep.subr.bf16.mxu0 0
    %1022 = vmatpush2.bf16.msra.mxu0 %v985
    %1023 = vmatprep.subr.bf16.mxu0 0
    %1024 = vmatpush2.bf16.msra.mxu0 %v984
    %1025 = vmatprep.subr.bf16.mxu0 0
    %1026 = vmatpush2.bf16.msra.mxu0 %v983
    %1027 = vmatprep.subr.bf16.mxu0 0
    %1028 = vmatpush2.bf16.msra.mxu0 %v982
    %1029 = vmatprep.subr.bf16.mxu0 0
    %1030 = vmatpush2.bf16.msra.mxu0 %v981
    %1031 = vmatprep.subr.bf16.mxu0 0
    %1032 = vmatpush2.bf16.msra.mxu0 %v980
    %1033 = vmatprep.subr.bf16.mxu0 0
    %1034 = vmatpush2.bf16.msra.mxu0 %v979
    %1035 = vmatprep.mubr.bf16.mxu0 %v868
    %1036 = vmatmul.mubr.bf16.gmra.mxu0 %v867
    %v1037 = vpop.f32.mrf.mxu0
    %v1038 = vadd.f32 %v905, %v1037
    %v1039 = vpop.f32.mrf.mxu0
    %v1040 = vpop.f32.mrf.mxu0
    %v1041 = vpop.f32.mrf.mxu0
    %1042 = vdwg.mxu0
    %v1043 = vmax.f32 %v1038, 0.0
    %v1044 = vpack.c.bf16 %v1043, %v1043
    %v1045 = vld [vmem:[#allocation8] sm:$0xf]
    %v1046 = vld [vmem:[#allocation8 + $0x4] sm:$0xf]
    %v1047 = vld [vmem:[#allocation8 + $0x8] sm:$0xf]
    %v1048 = vld [vmem:[#allocation8 + $0xc] sm:$0xf]
    %v1049 = vld [vmem:[#allocation8 + $0x10] sm:$0xf]
    %v1050 = vld [vmem:[#allocation8 + $0x14] sm:$0xf]
    %v1051 = vld [vmem:[#allocation8 + $0x18] sm:$0xf]
    %v1052 = vld [vmem:[#allocation8 + $0x1c] sm:$0xf]
    %v1053 = vld [vmem:[#allocation8 + $0x20] sm:$0xf]
    %v1054 = vld [vmem:[#allocation8 + $0x24] sm:$0xf]
    %v1055 = vld [vmem:[#allocation8 + $0x28] sm:$0xf]
    %v1056 = vld [vmem:[#allocation8 + $0x2c] sm:$0xf]
    %v1057 = vld [vmem:[#allocation8 + $0x30] sm:$0xf]
    %v1058 = vld [vmem:[#allocation8 + $0x34] sm:$0xf]
    %v1059 = vld [vmem:[#allocation8 + $0x38] sm:$0xf]
    %v1060 = vld [vmem:[#allocation8 + $0x3c] sm:$0xf]
    %v1062 = vlaneseq
    %v1063 = vshrl.u32 %v1062, 7
    %v1064 = vsub.s32 0, %v1063
    %v1065 = vrot.slane %v83, %v1064
    %v1083 = vunpack.c.l.b16 %v1045
    %v1084 = vunpack.c.l.b16 %v1046
    %v1085 = vunpack.c.l.b16 %v1047
    %v1086 = vunpack.c.l.b16 %v1048
    %v1087 = vunpack.c.l.b16 %v1049
    %v1088 = vunpack.c.l.b16 %v1050
    %v1089 = vunpack.c.l.b16 %v1051
    %v1090 = vunpack.c.l.b16 %v1052
    %v1091 = vunpack.c.l.b16 %v1053
    %v1092 = vunpack.c.l.b16 %v1054
    %v1093 = vunpack.c.l.b16 %v1055
    %v1094 = vunpack.c.l.b16 %v1056
    %v1095 = vunpack.c.l.b16 %v1057
    %v1096 = vunpack.c.l.b16 %v1058
    %v1097 = vunpack.c.l.b16 %v1059
    %v1098 = vunpack.c.l.b16 %v1060
    %v1099 = vpack.c.b16 %v1084, %v1083
    %v1100 = vpack.c.b16 %v1086, %v1085
    %v1101 = vpack.c.b16 %v1088, %v1087
    %v1102 = vpack.c.b16 %v1090, %v1089
    %v1103 = vpack.c.b16 %v1092, %v1091
    %v1104 = vpack.c.b16 %v1094, %v1093
    %v1105 = vpack.c.b16 %v1096, %v1095
    %v1106 = vpack.c.b16 %v1098, %v1097
    %1115 = vmatprep.subr.bf16.mxu0 0
    %1116 = vmatpush1.bf16.msra.mxu0 %v1106
    %1117 = vmatprep.subr.bf16.mxu0 0
    %1118 = vmatpush1.bf16.msra.mxu0 %v1105
    %1119 = vmatprep.subr.bf16.mxu0 0
    %1120 = vmatpush1.bf16.msra.mxu0 %v1104
    %1121 = vmatprep.subr.bf16.mxu0 0
    %1122 = vmatpush1.bf16.msra.mxu0 %v1103
    %1123 = vmatprep.subr.bf16.mxu0 0
    %1124 = vmatpush1.bf16.msra.mxu0 %v1102
    %1125 = vmatprep.subr.bf16.mxu0 0
    %1126 = vmatpush1.bf16.msra.mxu0 %v1101
    %1127 = vmatprep.subr.bf16.mxu0 0
    %1128 = vmatpush1.bf16.msra.mxu0 %v1100
    %1129 = vmatprep.subr.bf16.mxu0 0
    %1130 = vmatpush1.bf16.msra.mxu0 %v1099
    %1131 = vmatprep.subr.bf16.mxu0 0
    %1132 = vmatpush2.bf16.msra.mxu0 0
    %1133 = vmatprep.subr.bf16.mxu0 0
    %1134 = vmatpush2.bf16.msra.mxu0 0
    %1135 = vmatprep.subr.bf16.mxu0 0
    %1136 = vmatpush2.bf16.msra.mxu0 0
    %1137 = vmatprep.subr.bf16.mxu0 0
    %1138 = vmatpush2.bf16.msra.mxu0 0
    %1139 = vmatprep.subr.bf16.mxu0 0
    %1140 = vmatpush2.bf16.msra.mxu0 0
    %1141 = vmatprep.subr.bf16.mxu0 0
    %1142 = vmatpush2.bf16.msra.mxu0 0
    %1143 = vmatprep.subr.bf16.mxu0 0
    %1144 = vmatpush2.bf16.msra.mxu0 0
    %1145 = vmatprep.subr.bf16.mxu0 0
    %1146 = vmatpush2.bf16.msra.mxu0 0
    %1147 = vmatprep.mubr.bf16.mxu0 0
    %1148 = vmatmul.mubr.bf16.gmra.mxu0 %v1044
    %v1149 = vpop.f32.mrf.mxu0
    %v1150 = vadd.f32 %v1065, %v1149
    %v1151 = vpop.f32.mrf.mxu0
    %v1152 = vpop.f32.mrf.mxu0
    %v1153 = vpop.f32.mrf.mxu0
    %1154 = vdwg.mxu0
    %1155 = vst [vmem:[#allocation10] sm:$0xff] %v1150
    // Predicated region
    $region42: #{custom_network_forward.1} parent=1 // pred_check
      _
    $region43: #{custom_network_forward.1} parent=1 // pred_check_branch
      %1157 = sbr.rel (0) target = $region45
    $region44: #{custom_network_forward.1} parent=1 // pred_region
      %s1159 = ssub.s32 128, 128
      %1160 = vsyncadd [#allocation4], %s1159
      %s1162 = sshll.u32 [#allocation10], 4
      %s1163 = int_to_ptr.vmem [resolvable:$true] %s1162
      %1165 = dma.vmem_to_hbm [thread:$0]  %s1163, 128, %s6, [#allocation4]
    $region45: #{custom_network_forward.1} parent=1 // pred_fallthru
      _
    // Predicated region
    $region46: #{custom_network_forward.1} parent=1 // pred_check
      _
    $region47: #{custom_network_forward.1} parent=1 // pred_check_branch
      %1167 = sbr.rel (0) target = $region49
    $region48: #{custom_network_forward.1} parent=1 // pred_region
      %1168 = dma.done [#allocation4], 128
    $region49: #{custom_network_forward.1} parent=1 // pred_fallthru
      _
    %1169 = vsyncpa [#allocation3], 1
    %1170 = vsyncpa [#allocation6], 1
    %1171 = vsyncpa [#allocation9], 1
    %1172 = vsyncpa [#allocation4], 1

</llo_original>
